<compile_context>
chip_gen: v6e
topology: v6e:2x2x1
jax: 0.10.0
libtpu: 0.0.40
codegen_flags: <defaults>
</compile_context>

<pallas_src>
import functools

import numpy as np

import jax
import jax.numpy as jnp
from jax import lax
from jax.experimental import pallas as pl
from jax.experimental.pallas import tpu as pltpu

EPS = 1e-5

# Rotation convention of pltpu.roll. Defaults to jnp.roll semantics; the
# optional device probe in __main__ (run before any kernel is traced) corrects
# it if the installed Pallas version differs. Importing this module never
# raises.
_ROLL_LIKE_JNP = True


# ----------------------------------------------------------------------------
# In-kernel helpers
# ----------------------------------------------------------------------------

def _silu(y):
    return y * jax.nn.sigmoid(y)


def _shift_src(x, off):
    """Return s with s[:, f] = x[:, (f + off) % L].

    Wrapped lanes (image boundaries / ends of the lane group) are zeroed by the
    caller's boundary masks, so the circular wrap-around is harmless.
    """
    L = x.shape[-1]
    off = off % L
    if off == 0:
        return x
    amt = (L - off) % L if _ROLL_LIKE_JNP else off
    return pltpu.roll(x, amt, axis=1)


def _make_masks(img, H, W):
    """9 boundary masks (1, img*H*W), generated in-kernel from iota.

    mask[t][0, f] == 1 iff tap t's source pixel is inside the image owning
    flattened lane f (images laid out back-to-back in the lane dim)."""
    S = H * W
    lane = lax.broadcasted_iota(jnp.int32, (1, img * S), 1)
    p = lane % S
    i, j = p // W, p % W
    masks = []
    for dy in (-1, 0, 1):
        for dx in (-1, 0, 1):
            ok = ((i + dy >= 0) & (i + dy < H)) & ((j + dx >= 0) & (j + dx < W))
            masks.append(ok.astype(jnp.float32))
    return masks


def _dw3x3_bn(x, wb, masks, W):
    """Depthwise 3x3 conv (stride 1, zero pad 1) with folded BatchNorm.

    x:     (C, L) activations, channels in rows, pixels (img*H*W) in lanes.
    wb:    (10, C, 1) BN-folded weights, taps 0..8 ((dy,dx) row-major),
           row 9 = bias.
    masks: list of 9 (1, L) 0/1 masks.
    """
    acc = jnp.zeros(x.shape, jnp.float32)
    t = 0
    for dy in (-1, 0, 1):
        for dx in (-1, 0, 1):
            src = _shift_src(x, dy * W + dx)
            acc = acc + (src * masks[t]) * wb[t]
            t += 1
    return acc + wb[9]


def _mm(w_bf16, act):
    """1x1 conv as MXU matmul: bf16 operands, f32 accumulation."""
    return jnp.dot(w_bf16, act.astype(jnp.bfloat16),
                   preferred_element_type=jnp.float32)


# ----------------------------------------------------------------------------
# Fused EncoderBlock kernel
# ----------------------------------------------------------------------------

def _encoder_block_kernel(x_ref, e_ref, sel_ref,
                          bdw1_ref, bpw1_ref, bpb1_ref, bdw2_ref, bwf_ref,
                          bbf_ref,
                          ddw1_ref, dpw1_ref, dpb1_ref, ddw2_ref, dwf_ref,
                          dbf_ref,
                          down_ref, short_ref,
                          *, H, W, img, units, with_time):
    S = H * W
    masks = _make_masks(img, H, W)        # computed once, reused by all dw convs

    x0 = x_ref[...]                       # (Cin, img*S) f32
    x = x0

    # ---- conv0: `units` ResidualBottleneck units, fully in vregs/VMEM --------
    for u in range(units):
        ch = x.shape[0] // 2
        x1, x2 = x[:ch], x[ch:]
        # branch 1: depthwise 3x3 + BN
        z1 = _dw3x3_bn(x1, bdw1_ref[u], masks, W)
        # branch 2: 1x1 + BN + SiLU, then depthwise 3x3 + BN
        a2 = _silu(_mm(bpw1_ref[u], x2) + bpb1_ref[u])
        z2 = _dw3x3_bn(a2, bdw2_ref[u], masks, W)
        # both final 1x1 convs as ONE matmul on the K-stacked [z1; z2];
        # concat + ChannelShuffle(2) folded into interleaved weight rows.
        z = jnp.concatenate([z1, z2], axis=0)
        x = _silu(_mm(bwf_ref[u], z) + bbf_ref[u])        # (Cmid, img*S)

    short_ref[...] = x.astype(short_ref.dtype)

    # ---- TimeMLP shortcut: x + t_emb, SiLU ------------------------------------
    if with_time:
        e = e_ref[...]                                     # (img, Cmid, 1)
        e_l = jnp.concatenate(
            [jnp.broadcast_to(e[i], (x.shape[0], S)) for i in range(img)],
            axis=1)
        xd = _silu(x + e_l)
    else:
        # Faithful to the PyTorch module: with t=None the downsample consumes
        # the *raw block input* (no SiLU); conv0's output is only the shortcut.
        xd = x0

    # ---- ResidualDownsample ----------------------------------------------------
    z1 = _dw3x3_bn(xd, ddw1_ref[...], masks, W)            # (Cd,  L)
    a2 = _silu(_mm(dpw1_ref[...], xd) + dpb1_ref[...])     # (O/2, L)
    z2 = _dw3x3_bn(a2, ddw2_ref[...], masks, W)            # (O/2, L)
    zf = jnp.concatenate([z1, z2], axis=0)                 # (Cd+O/2, L)

    # stride-2 decimation: per-image 0/1 picker matmul (bf16 operands, f32 acc).
    # TODO(synk): factored row/col decimation for large H*W (S^2/4 growth).
    sel = sel_ref[...]                                     # (S, So) bf16
    zd = jnp.concatenate(
        [jnp.dot(zf[:, i * S:(i + 1) * S].astype(jnp.bfloat16), sel,
                 preferred_element_type=jnp.float32) for i in range(img)],
        axis=1)                                            # (Cd+O/2, img*So)

    y = _silu(_mm(dwf_ref[...], zd) + dbf_ref[...])        # (O, img*So)
    down_ref[...] = y.astype(down_ref.dtype)


# ----------------------------------------------------------------------------
# Wrapper-side parameter folding / geometry constants (trace-time, tiny)
# ----------------------------------------------------------------------------

def _bn_scale_shift(bn):
    scale = bn["gamma"] / jnp.sqrt(bn["var"] + EPS)
    shift = bn["beta"] - bn["mean"] * scale
    return scale, shift


def _prep_pw(p):
    """1x1 conv + BN folded, channels-as-rows: bf16 (Cout, Cin), f32 (Cout, 1)."""
    scale, shift = _bn_scale_shift(p["bn"])
    w = (p["w"].T * scale[:, None]).astype(jnp.bfloat16)
    b = (p["b"] * scale + shift)[:, None].astype(jnp.float32)
    return w, b


def _prep_dw(p):
    """Depthwise 3x3 conv + BN folded, packed (10, C, 1): taps 0..8 + bias row."""
    c = p["w"].shape[0]
    scale, shift = _bn_scale_shift(p["bn"])
    w = (p["w"].reshape(c, 9) * scale[:, None]).T          # (9, C)
    b = (p["b"] * scale + shift)[None, :]                  # (1, C)
    return jnp.concatenate([w, b], axis=0)[:, :, None].astype(jnp.float32)


def _combined_final(p_branch1, p_branch2):
    """Fold concat + ChannelShuffle(2) + BOTH final 1x1 convs into one matmul:
    branch1 weights on even output rows, branch2 on odd rows; the two K blocks
    act on the K-stacked [z1; z2] activation."""
    wa, ba = _prep_pw(p_branch1)
    wb, bb = _prep_pw(p_branch2)
    o2 = wa.shape[0]
    w1 = jnp.stack([wa, jnp.zeros_like(wa)], axis=1).reshape(2 * o2, wa.shape[1])
    w2 = jnp.stack([jnp.zeros_like(wb), wb], axis=1).reshape(2 * o2, wb.shape[1])
    w = jnp.concatenate([w1, w2], axis=1).astype(jnp.bfloat16)   # (O, K1+K2)
    b = jnp.stack([ba, bb], axis=1).reshape(2 * o2, 1)
    return w, b


def _prep_bottleneck_stack(units_params):
    """Stack per-unit BN-folded params along a leading 'unit' axis."""
    dw1, pw1w, pw1b, dw2, wf, bf = [], [], [], [], [], []
    for p in units_params:
        dw1.append(_prep_dw(p["b1_dw"]))
        w, b = _prep_pw(p["b2_pw1"])
        pw1w.append(w)
        pw1b.append(b)
        dw2.append(_prep_dw(p["b2_dw"]))
        w2, b2 = _combined_final(p["b1_pw"], p["b2_pw2"])
        wf.append(w2)
        bf.append(b2)
    return (jnp.stack(dw1), jnp.stack(pw1w), jnp.stack(pw1b),
            jnp.stack(dw2), jnp.stack(wf), jnp.stack(bf))


def _make_stride2_sel(H, W):
    """(H*W, (H/2)*(W/2)) 0/1 picker of even-row/even-col pixels (bf16)."""
    Ho, Wo = H // 2, W // 2
    sel = np.zeros((H * W, Ho * Wo), np.float32)
    g = np.arange(Ho * Wo)
    src = (2 * (g // Wo)) * W + 2 * (g % Wo)
    sel[src, g] = 1.0
    return jnp.asarray(sel, dtype=jnp.bfloat16)


def _const_spec(arr):
    zeros = (0,) * arr.ndim
    return pl.BlockSpec(arr.shape, lambda b: zeros)


# ----------------------------------------------------------------------------
# Pallas-backed EncoderBlock forward
# ----------------------------------------------------------------------------

def encoder_block_forward(params, x_nchw, t):
    """EncoderBlock.forward: returns (downsampled, shortcut), both NCHW."""
    n, cin, hh, ww = x_nchw.shape
    assert hh % 2 == 0 and ww % 2 == 0
    # TODO(synk): odd batch sizes (images are folded into lanes in pairs).
    assert n % 2 == 0, "batch must be even"
    img = 2                                        # images per grid step
    s, so = hh * ww, (hh // 2) * (ww // 2)

    with_time = t is not None

    # BN-folded, bf16 weights; per-unit params stacked along a leading axis.
    bdw1, bpw1, bpb1, bdw2, bwf, bbf = _prep_bottleneck_stack(params["conv0"])
    units = bdw1.shape[0]
    c_mid = bwf.shape[1]                           # conv0 output channels

    pd = params["conv1"]
    ddw1 = _prep_dw(pd["b1_dw"])
    dpw1, dpb1 = _prep_pw(pd["b2_pw1"])
    ddw2 = _prep_dw(pd["b2_dw"])
    dwf, dbf = _combined_final(pd["b1_pw"], pd["b2_pw2"])
    c_out = dwf.shape[0]

    sel = _make_stride2_sel(hh, ww)

    if with_time:
        tm = params["time_mlp"]
        e = (jax.nn.silu(t @ tm["w1"] + tm["b1"]) @ tm["w2"] + tm["b2"])
        e = e[:, :, None].astype(jnp.float32)      # (N, Cmid, 1)
    else:
        assert cin == c_mid                        # PyTorch no-time path
        e = jnp.zeros((n, c_mid, 1), jnp.float32)

    # channels-as-rows, batch folded into the lane dimension: (C, N*S)
    x_l = jnp.transpose(x_nchw.reshape(n, cin, s), (1, 0, 2)).reshape(cin, n * s)

    kern = functools.partial(_encoder_block_kernel, H=hh, W=ww, img=img,
                             units=units, with_time=with_time)

    down_l, short_l = pl.pallas_call(
        kern,
        out_shape=(jax.ShapeDtypeStruct((c_out, n * so), jnp.float32),
                   jax.ShapeDtypeStruct((c_mid, n * s), jnp.float32)),
        grid=(n // img,),
        in_specs=[
            pl.BlockSpec((cin, img * s), lambda b: (0, b)),       # x (lane group)
            pl.BlockSpec((img, c_mid, 1), lambda b: (b, 0, 0)),   # time embedding
            _const_spec(sel),
            _const_spec(bdw1), _const_spec(bpw1), _const_spec(bpb1),
            _const_spec(bdw2), _const_spec(bwf), _const_spec(bbf),
            _const_spec(ddw1), _const_spec(dpw1), _const_spec(dpb1),
            _const_spec(ddw2), _const_spec(dwf), _const_spec(dbf),
        ],
        out_specs=(pl.BlockSpec((c_out, img * so), lambda b: (0, b)),
                   pl.BlockSpec((c_mid, img * s), lambda b: (0, b))),
        compiler_params=pltpu.CompilerParams(
            dimension_semantics=("parallel",),
            vmem_limit_bytes=32 * 1024 * 1024),
    )(x_l, e, sel, bdw1, bpw1, bpb1, bdw2, bwf, bbf,
      ddw1, dpw1, dpb1, ddw2, dwf, dbf)

    down = jnp.transpose(down_l.reshape(c_out, n, hh // 2, ww // 2), (1, 0, 2, 3))
    short = jnp.transpose(short_l.reshape(c_mid, n, hh, ww), (1, 0, 2, 3))
    return down, short


# ----------------------------------------------------------------------------
# pltpu.roll convention probe (optional; correct the static default on device)
# ----------------------------------------------------------------------------

def _detect_roll_convention():
    global _ROLL_LIKE_JNP

    def kern(x_ref, o_ref):
        o_ref[...] = pltpu.roll(x_ref[...], 1, axis=1)

    x = jnp.tile(jnp.arange(128, dtype=jnp.float32)[None, :], (8, 1))
    out = pl.pallas_call(
        kern,
        out_shape=jax.ShapeDtypeStruct((8, 128), jnp.float32),
        in_specs=[pl.BlockSpec(memory_space=pltpu.MemorySpace.VMEM)],
        out_specs=pl.BlockSpec(memory_space=pltpu.MemorySpace.VMEM),
    )(x)
    # jnp.roll convention: rolling by +1 brings the last element to index 0.
    _ROLL_LIKE_JNP = bool(abs(float(out[0, 0]) - 127.0) < 0.5)


# ----------------------------------------------------------------------------
# Parameter init (deterministic, synthetic)
# ----------------------------------------------------------------------------

def init_bn(key, c):
    k1, k2, k3, k4 = jax.random.split(key, 4)
    return dict(
        gamma=1.0 + 0.1 * jax.random.normal(k1, (c,), jnp.float32),
        beta=0.1 * jax.random.normal(k2, (c,), jnp.float32),
        mean=0.1 * jax.random.normal(k3, (c,), jnp.float32),
        var=1.0 + 0.1 * jnp.abs(jax.random.normal(k4, (c,), jnp.float32)),
    )


def init_pw(key, cin, cout):
    k1, k2, k3 = jax.random.split(key, 3)
    s = 1.0 / (cin ** 0.5)
    return dict(
        w=jax.random.uniform(k1, (cin, cout), jnp.float32, -s, s),
        b=jax.random.uniform(k2, (cout,), jnp.float32, -s, s),
        bn=init_bn(k3, cout),
    )


def init_dw(key, c):
    k1, k2, k3 = jax.random.split(key, 3)
    s = 1.0 / 3.0
    return dict(
        w=jax.random.uniform(k1, (c, 3, 3), jnp.float32, -s, s),
        b=jax.random.uniform(k2, (c,), jnp.float32, -s, s),
        bn=init_bn(k3, c),
    )


def init_bottleneck(key, cin, cout):
    h, o = cin // 2, cout // 2
    ks = jax.random.split(key, 5)
    return dict(
        b1_dw=init_dw(ks[0], h),
        b1_pw=init_pw(ks[1], h, o),
        b2_pw1=init_pw(ks[2], h, h),
        b2_dw=init_dw(ks[3], h),
        b2_pw2=init_pw(ks[4], h, o),
    )


def init_downsample(key, cin, cout):
    o = cout // 2
    ks = jax.random.split(key, 5)
    return dict(
        b1_dw=init_dw(ks[0], cin),
        b1_pw=init_pw(ks[1], cin, o),
        b2_pw1=init_pw(ks[2], cin, o),
        b2_dw=init_dw(ks[3], o),
        b2_pw2=init_pw(ks[4], o, o),
    )


def init_time_mlp(key, emb, hidden, out):
    k1, k2, k3, k4 = jax.random.split(key, 4)
    s1 = 1.0 / (emb ** 0.5)
    s2 = 1.0 / (hidden ** 0.5)
    return dict(
        w1=jax.random.uniform(k1, (emb, hidden), jnp.float32, -s1, s1),
        b1=jax.random.uniform(k2, (hidden,), jnp.float32, -s1, s1),
        w2=jax.random.uniform(k3, (hidden, out), jnp.float32, -s2, s2),
        b2=jax.random.uniform(k4, (out,), jnp.float32, -s2, s2),
    )


def init_encoder_block(key, cin, cout, temb_dim):
    ks = jax.random.split(key, 6)
    conv0 = [init_bottleneck(ks[i], cin, cin) for i in range(3)]
    conv0.append(init_bottleneck(ks[3], cin, cout // 2))
    return dict(
        conv0=conv0,
        time_mlp=init_time_mlp(ks[4], temb_dim, cout, cout // 2),
        conv1=init_downsample(ks[5], cout // 2, cout),
    )


# ----------------------------------------------------------------------------
# Plain-JAX reference (correctness check only; uses raw, unfolded params)
# ----------------------------------------------------------------------------

def _ref_channel_shuffle(x_nhwc, groups=2):
    n, h, w, c = x_nhwc.shape
    x = x_nhwc.reshape(n, h, w, groups, c // groups)
    x = jnp.swapaxes(x, 3, 4)
    return x.reshape(n, h, w, c)


def _ref_bn(x, bn):
    return (x - bn["mean"]) / jnp.sqrt(bn["var"] + EPS) * bn["gamma"] + bn["beta"]


def _ref_pw(p, x, act=True):
    y = jnp.einsum("nhwc,cd->nhwd", x, p["w"]) + p["b"]
    y = _ref_bn(y, p["bn"])
    return jax.nn.silu(y) if act else y


def _ref_dw(p, x, stride=1):
    c = x.shape[-1]
    rhs = jnp.transpose(p["w"], (1, 2, 0))[:, :, None, :]  # HWIO, I=1
    y = lax.conv_general_dilated(
        x, rhs, window_strides=(stride, stride), padding=((1, 1), (1, 1)),
        dimension_numbers=("NHWC", "HWIO", "NHWC"), feature_group_count=c)
    return _ref_bn(y + p["b"], p["bn"])


def _ref_bottleneck(p, x):
    c = x.shape[-1]
    x1, x2 = x[..., :c // 2], x[..., c // 2:]
    y1 = _ref_pw(p["b1_pw"], _ref_dw(p["b1_dw"], x1))
    y2 = _ref_pw(p["b2_pw2"], _ref_dw(p["b2_dw"], _ref_pw(p["b2_pw1"], x2)))
    return _ref_channel_shuffle(jnp.concatenate([y1, y2], -1), 2)


def _ref_downsample(p, x):
    y1 = _ref_pw(p["b1_pw"], _ref_dw(p["b1_dw"], x, stride=2))
    y2 = _ref_pw(p["b2_pw2"], _ref_dw(p["b2_dw"], _ref_pw(p["b2_pw1"], x), stride=2))
    return _ref_channel_shuffle(jnp.concatenate([y1, y2], -1), 2)


def ref_forward(params, x_nchw, t):
    x = jnp.transpose(x_nchw, (0, 2, 3, 1))
    for p in params["conv0"]:
        x = _ref_bottleneck(p, x)
    xs = x
    tm = params["time_mlp"]
    h = jax.nn.silu(t @ tm["w1"] + tm["b1"])
    e = h @ tm["w2"] + tm["b2"]
    x = jax.nn.silu(xs + e[:, None, None, :])
    x = _ref_downsample(params["conv1"], x)
    return jnp.transpose(x, (0, 3, 1, 2)), jnp.transpose(xs, (0, 3, 1, 2))


# ----------------------------------------------------------------------------

if __name__ == "__main__":
    _detect_roll_convention()

    key = jax.random.PRNGKey(0)
    kp, kx, kt = jax.random.split(key, 3)

    # Unet(base_dim=32, dim_mults=[2,4]) first encoder block:
    # EncoderBlock(32, 64, time_embedding_dim=32).
    in_ch, out_ch, temb_dim = 32, 64, 32
    N, H, W = 4, 16, 16

    params = init_encoder_block(kp, in_ch, out_ch, temb_dim)
    x = jax.random.normal(kx, (N, in_ch, H, W), jnp.float32)
    t = jax.random.normal(kt, (N, temb_dim), jnp.float32)

    fwd = jax.jit(encoder_block_forward)
    out, shortcut = fwd(params, x, t)
    jax.block_until_ready((out, shortcut))

    assert out.shape == (N, out_ch, H // 2, W // 2)
    assert shortcut.shape == (N, out_ch // 2, H, W)

    ref_out, ref_short = ref_forward(params, x, t)
    # Tolerance covers BN folding reassociation + bf16 MXU operands (f32 acc).
    assert jnp.allclose(out, ref_out, atol=5e-2, rtol=5e-2), "downsample mismatch"
    assert jnp.allclose(shortcut, ref_short, atol=5e-2, rtol=5e-2), "shortcut mismatch"

    print("KERNEL_OK")
</pallas_src>

<mosaic_0001>
module attributes {stable_mosaic.version = 11 : i64} {
  func.func @kern(%arg0: memref<8x128xf32, #tpu.memory_space<vmem>>, %arg1: memref<8x128xf32, #tpu.memory_space<vmem>>) attributes {dimension_semantics = [], scalar_prefetch = 0 : i64, scratch_operands = 0 : i64, tpu.core_type = #tpu.core_type<tc>} {
    %c0 = arith.constant 0 : index
    %c0_0 = arith.constant 0 : index
    %0 = vector.load %arg0[%c0, %c0_0] : memref<8x128xf32, #tpu.memory_space<vmem>>, vector<8x128xf32>
    %c1_i32 = arith.constant 1 : i32
    %1 = tpu.dynamic_rotate %0 by %c1_i32 dim 1 : vector<8x128xf32>, i32 -> vector<8x128xf32>
    %c0_1 = arith.constant 0 : index
    %c0_2 = arith.constant 0 : index
    %2 = vector.load %arg1[%c0_1, %c0_2] : memref<8x128xf32, #tpu.memory_space<vmem>>, vector<8x128xf32>
    tpu.vector_store %arg1[%c0_1, %c0_2], %1 {strides = array<i32>} : memref<8x128xf32, #tpu.memory_space<vmem>>, vector<8x128xf32>,
    return
  }
}

</mosaic_0001>

<llo_original>
// kernel: tpu_custom_call.1
$region0: #{tpu_custom_call.1}
  #allocation0 [shape = 'u32[]', space=smem, size = 0x4, offset = 0x4, fixed_abs, tag = 'smem constant byte address 0x4 - core index']
  #allocation1 [shape = 'u32[144,128]{1,0:T(1,128)}', space=vmem, size = 0x12000, scoped, tag = 'internal scratch']
  %s0 = inlined_call_operand.hbm [shape: f32[8,128], index: 0, kind: input, shape index: {}]
  %s1 = inlined_call_operand.hbm [shape: f32[8,128], index: 1, kind: output, shape index: {}]
  %s2 = sld [smem:[#allocation0]]
  $region18: #{tpu_custom_call.1} parent=0
    _
  %s4 = ssub.s32 1, %s2
  %s5 = scalar_select 0, %s4, %s2
  $region1: #{tpu_custom_call.1} parent=0
    #allocation2 [shape = 'u8[4096]{0}', space=vmem, size = 0x1000, scoped, tag = 'input window, operand 0, single buffered']
    #allocation3 [shape = 's32[1]{0}', space=sflag, size = 0x4, scoped, tag = 'scoped memory for tpu_custom_call.1']
    #allocation4 [shape = 's32[1]{0}', space=sflag, size = 0x4, scoped, tag = 'scoped memory for tpu_custom_call.1']
    #allocation5 [shape = 'u8[4096]{0}', space=vmem, size = 0x1000, scoped, tag = 'output window, operand 0, single buffered']
    %6 = vsyncpa [#allocation3], 0
    %7 = vsyncpa [#allocation4], 0
    // Predicated region
    $region2: #{tpu_custom_call.1} parent=1 // pred_check
      _
    $region3: #{tpu_custom_call.1} parent=1 // pred_check_branch
      %9 = sbr.rel (0) target = $region5
    $region4: #{tpu_custom_call.1} parent=1 // pred_region
      %s11 = ssub.s32 128, 128
      %12 = vsyncadd [#allocation3], %s11
      %s14 = sshll.u32 [#allocation2], 4
      %s15 = int_to_ptr.vmem [resolvable:$true] %s14
      %17 = dma.hbm_to_vmem [thread:$0]  %s0, 128, %s15, [#allocation3]
    $region5: #{tpu_custom_call.1} parent=1 // pred_fallthru
      _
    // Predicated region
    $region6: #{tpu_custom_call.1} parent=1 // pred_check
      _
    $region7: #{tpu_custom_call.1} parent=1 // pred_check_branch
      %19 = sbr.rel (0) target = $region9
    $region8: #{tpu_custom_call.1} parent=1 // pred_region
      %20 = dma.done [#allocation3], 128
    $region9: #{tpu_custom_call.1} parent=1 // pred_fallthru
      _
    %v21 = vld [vmem:[#allocation2] sm:$0xff]
    %22 = vrot.lane.b32.xlu0 %v21, 1
    %v23 = vpop.permute.xlu0 %22
    %24 = vst [vmem:[#allocation5] sm:$0xff] %v23
    // Predicated region
    $region10: #{tpu_custom_call.1} parent=1 // pred_check
      _
    $region11: #{tpu_custom_call.1} parent=1 // pred_check_branch
      %26 = sbr.rel (0) target = $region13
    $region12: #{tpu_custom_call.1} parent=1 // pred_region
      %s28 = ssub.s32 128, 128
      %29 = vsyncadd [#allocation4], %s28
      %s31 = sshll.u32 [#allocation5], 4
      %s32 = int_to_ptr.vmem [resolvable:$true] %s31
      %34 = dma.vmem_to_hbm [thread:$0]  %s32, 128, %s1, [#allocation4]
    $region13: #{tpu_custom_call.1} parent=1 // pred_fallthru
      _
    // Predicated region
    $region14: #{tpu_custom_call.1} parent=1 // pred_check
      _
    $region15: #{tpu_custom_call.1} parent=1 // pred_check_branch
      %36 = sbr.rel (0) target = $region17
    $region16: #{tpu_custom_call.1} parent=1 // pred_region
      %37 = dma.done [#allocation4], 128
    $region17: #{tpu_custom_call.1} parent=1 // pred_fallthru
      _
    %38 = vsyncpa [#allocation3], 1
    %39 = vsyncpa [#allocation4], 1

</llo_original>
